<compile_context>
chip_gen: v5e
topology: v5e:2x2
jax: 0.10.0
libtpu: 0.0.40
codegen_flags: <defaults>
</compile_context>

<pallas_src>
import jax
import jax.numpy as jnp
from jax.experimental import pallas as pl
from jax.experimental.pallas import tpu as pltpu

HIDDEN = 128        # fc1 output width
N_ACT = 9           # board cells / policy logits
DEFAULT_TB = 1024   # batch tile (multiple of 8); big tiles amortize grid-step overhead


def _round_up(n, m):
    return ((n + m - 1) // m) * m


def actor_critic_kernel(x_ref, w1_ref, b1_ref, wa_ref, ba_ref, wc_ref, bc_ref,
                        logits_ref, value_ref):
    # x: [tb, 9] f32 -> cast to bf16 in-kernel (avoids a wrapper-side full-HBM
    # cast pass; VALU has slack so the cast is free).
    xb = x_ref[...].astype(jnp.bfloat16)

    # fc1 + relu: [tb, 9] x [9, 128] -> [tb, 128] f32
    h = jnp.dot(xb, w1_ref[...], preferred_element_type=jnp.float32) + b1_ref[...]
    h = jnp.maximum(h, 0.0)

    # actor head on the MXU (bf16 in, f32 accumulate): [tb, 128] x [128, 9]
    logits_ref[...] = (
        jnp.dot(h.astype(jnp.bfloat16), wa_ref[...],
                preferred_element_type=jnp.float32) + ba_ref[...])

    # critic head as full-f32 VPU multiply + lane reduce (XLU slot, free):
    # avoids an N=1 MXU matmul and keeps the value in f32 precision.
    value_ref[...] = (jnp.sum(h * wc_ref[...], axis=-1, keepdims=True)
                      + bc_ref[...])


def actor_critic_forward(x, packed, *, tb=DEFAULT_TB):
    """x: [B, 9] float32. packed: dict from pack_params().

    Returns (policy_logits [B, 9] f32, value [B, 1] f32)."""
    B = x.shape[0]

    # Don't allocate a block much larger than the batch.
    tb = min(tb, _round_up(B, 8))
    # Keep at least 2 grid steps when the batch allows, so the "parallel"
    # grid axis can shard over v7x's two TensorCores.
    if B > 8 and pl.cdiv(B, tb) < 2:
        tb = _round_up(pl.cdiv(B, 2), 8)
    grid_b = pl.cdiv(B, tb)

    flops = 2 * B * (N_ACT * HIDDEN + HIDDEN * N_ACT + HIDDEN)
    bytes_accessed = (B * (N_ACT * 4 + N_ACT * 4 + 4)            # x + logits + value
                      + N_ACT * HIDDEN * 2 + HIDDEN * 4          # w1 + b1
                      + HIDDEN * N_ACT * 2 + N_ACT * 4           # wa + ba
                      + HIDDEN * 4 + 4)                          # wc + bc

    logits, value = pl.pallas_call(
        actor_critic_kernel,
        out_shape=(jax.ShapeDtypeStruct((B, N_ACT), jnp.float32),
                   jax.ShapeDtypeStruct((B, 1), jnp.float32)),
        grid=(grid_b,),
        in_specs=[
            pl.BlockSpec((tb, N_ACT), lambda i: (i, 0)),         # x   (blocked on batch)
            pl.BlockSpec((N_ACT, HIDDEN), lambda i: (0, 0)),     # w1  (resident)
            pl.BlockSpec((1, HIDDEN), lambda i: (0, 0)),         # b1  (resident)
            pl.BlockSpec((HIDDEN, N_ACT), lambda i: (0, 0)),     # wa  (resident)
            pl.BlockSpec((1, N_ACT), lambda i: (0, 0)),          # ba  (resident)
            pl.BlockSpec((1, HIDDEN), lambda i: (0, 0)),         # wc  (row vector)
            pl.BlockSpec((1, 1), lambda i: (0, 0)),              # bc
        ],
        out_specs=(pl.BlockSpec((tb, N_ACT), lambda i: (i, 0)),
                   pl.BlockSpec((tb, 1), lambda i: (i, 0))),
        compiler_params=pltpu.CompilerParams(
            dimension_semantics=("parallel",),                   # megacore on v7x
            vmem_limit_bytes=32 * 1024 * 1024),                  # raise v5e default
        cost_estimate=pl.CostEstimate(flops=flops, transcendentals=0,
                                      bytes_accessed=bytes_accessed),
    )(x, packed["w1"], packed["b1"], packed["wa"], packed["ba"],
      packed["wc"], packed["bc"])
    return logits, value


def init_params(key):
    """PyTorch nn.Linear-style init (U[-k, k], k = 1/sqrt(fan_in)).
    Weights stored as [in, out] (transposed vs. PyTorch's [out, in])."""
    ks = jax.random.split(key, 6)

    def linear(kw, kb, fan_in, fan_out):
        bound = float(fan_in) ** -0.5
        w = jax.random.uniform(kw, (fan_in, fan_out), jnp.float32, -bound, bound)
        b = jax.random.uniform(kb, (1, fan_out), jnp.float32, -bound, bound)
        return w, b

    w1, b1 = linear(ks[0], ks[1], N_ACT, HIDDEN)
    wa, ba = linear(ks[2], ks[3], HIDDEN, N_ACT)
    wc, bc = linear(ks[4], ks[5], HIDDEN, 1)
    return {"w1": w1, "b1": b1, "wa": wa, "ba": ba, "wc": wc, "bc": bc}


def pack_params(params):
    """One-time packing: cast matmul weights to bf16 (native MXU input); keep
    biases and the critic row vector in f32 (critic head stays full f32)."""
    return {
        "w1": params["w1"].astype(jnp.bfloat16),                 # [9, 128] bf16
        "b1": params["b1"].astype(jnp.float32),                  # [1, 128] f32
        "wa": params["wa"].astype(jnp.bfloat16),                 # [128, 9] bf16
        "ba": params["ba"].astype(jnp.float32),                  # [1, 9]   f32
        "wc": params["wc"].reshape(1, HIDDEN).astype(jnp.float32),  # [1, 128] f32
        "bc": params["bc"].astype(jnp.float32),                  # [1, 1]   f32
    }


def reference_forward_bf16(x, packed):
    """Pure-JAX reference with the exact same casts as the kernel."""
    h = jnp.dot(x.astype(jnp.bfloat16), packed["w1"],
                preferred_element_type=jnp.float32) + packed["b1"]
    h = jnp.maximum(h, 0.0)
    logits = jnp.dot(h.astype(jnp.bfloat16), packed["wa"],
                     preferred_element_type=jnp.float32) + packed["ba"]
    value = jnp.sum(h * packed["wc"], axis=-1, keepdims=True) + packed["bc"]
    return logits, value


def reference_forward_f32(x, params):
    """Original (all-f32) module semantics."""
    h = jnp.maximum(x @ params["w1"] + params["b1"], 0.0)
    return h @ params["wa"] + params["ba"], h @ params["wc"] + params["bc"]


if __name__ == "__main__":
    key = jax.random.PRNGKey(0)
    k_param, k_x = jax.random.split(key)

    params = init_params(k_param)
    packed = pack_params(params)

    # Small batch; deliberately NOT a multiple of 8 so the wrapper picks a 2-step
    # grid with a ragged last block (exercises Pallas output masking).
    B = 200
    x = jax.random.uniform(k_x, (B, N_ACT), jnp.float32, -1.0, 1.0)

    logits, value = actor_critic_forward(x, packed)
    logits, value = jax.block_until_ready((logits, value))

    assert logits.shape == (B, N_ACT) and value.shape == (B, 1)

    # Tight check against a reference that applies identical casts.
    ref_logits, ref_value = reference_forward_bf16(x, packed)
    assert jnp.allclose(logits, ref_logits, atol=1e-3, rtol=1e-3)
    assert jnp.allclose(value, ref_value, atol=1e-3, rtol=1e-3)

    # Looser check against the original full-f32 module semantics.
    f32_logits, f32_value = reference_forward_f32(x, params)
    assert jnp.allclose(logits, f32_logits, atol=2e-2, rtol=2e-2)
    assert jnp.allclose(value, f32_value, atol=2e-2, rtol=2e-2)

    print("KERNEL_OK")
</pallas_src>

<mosaic_0001>
module attributes {stable_mosaic.version = 11 : i64} {
  func.func @actor_critic_kernel(%arg0: i32, %arg1: memref<104x9xf32, #tpu.memory_space<vmem>>, %arg2: memref<9x128xbf16, #tpu.memory_space<vmem>>, %arg3: memref<1x128xf32, #tpu.memory_space<vmem>>, %arg4: memref<128x9xbf16, #tpu.memory_space<vmem>>, %arg5: memref<1x9xf32, #tpu.memory_space<vmem>>, %arg6: memref<1x128xf32, #tpu.memory_space<vmem>>, %arg7: memref<1x1xf32, #tpu.memory_space<vmem>>, %arg8: memref<104x9xf32, #tpu.memory_space<vmem>>, %arg9: memref<104x1xf32, #tpu.memory_space<vmem>>) attributes {dimension_semantics = [#tpu.dimension_semantics<parallel>], iteration_bounds = array<i64: 2>, scalar_prefetch = 0 : i64, scratch_operands = 0 : i64, tpu.core_type = #tpu.core_type<tc>, window_params = [{transform_indices = @transform_0, window_bounds = array<i64: 104, 9>}, {pipeline_mode = #tpu.pipeline_mode<synchronous>, transform_indices = @transform_1, window_bounds = array<i64: 9, 128>}, {pipeline_mode = #tpu.pipeline_mode<synchronous>, transform_indices = @transform_2, window_bounds = array<i64: 1, 128>}, {pipeline_mode = #tpu.pipeline_mode<synchronous>, transform_indices = @transform_3, window_bounds = array<i64: 128, 9>}, {pipeline_mode = #tpu.pipeline_mode<synchronous>, transform_indices = @transform_4, window_bounds = array<i64: 1, 9>}, {pipeline_mode = #tpu.pipeline_mode<synchronous>, transform_indices = @transform_5, window_bounds = array<i64: 1, 128>}, {pipeline_mode = #tpu.pipeline_mode<synchronous>, transform_indices = @transform_6, window_bounds = array<i64: 1, 1>}, {transform_indices = @transform_7, window_bounds = array<i64: 104, 9>}, {transform_indices = @transform_8, window_bounds = array<i64: 104, 1>}]} {
    %c0 = arith.constant 0 : index
    %c0_0 = arith.constant 0 : index
    %0 = vector.load %arg1[%c0, %c0_0] : memref<104x9xf32, #tpu.memory_space<vmem>>, vector<104x9xf32>
    %1 = arith.truncf %0 : vector<104x9xf32> to vector<104x9xbf16>
    %c0_1 = arith.constant 0 : index
    %c0_2 = arith.constant 0 : index
    %2 = vector.load %arg2[%c0_1, %c0_2] : memref<9x128xbf16, #tpu.memory_space<vmem>>, vector<9x128xbf16>
    %cst = arith.constant dense<0.000000e+00> : vector<104x128xf32>
    %3 = tpu.matmul %1, %2, %cst {dimension_numbers = #tpu.dot_dimension_numbers<[1], [0], [0], [1], [0, 0, 1, 1], [], []>} : vector<104x9xbf16>, vector<9x128xbf16>, vector<104x128xf32> -> vector<104x128xf32>
    %c0_3 = arith.constant 0 : index
    %c0_4 = arith.constant 0 : index
    %4 = vector.load %arg3[%c0_3, %c0_4] : memref<1x128xf32, #tpu.memory_space<vmem>>, vector<1x128xf32>
    %5 = vector.broadcast %4 : vector<1x128xf32> to vector<104x128xf32>
    %6 = arith.addf %3, %5 : vector<104x128xf32>
    %cst_5 = arith.constant 0.000000e+00 : f32
    %7 = vector.broadcast %cst_5 : f32 to vector<104x128xf32>
    %8 = arith.maximumf %6, %7 : vector<104x128xf32>
    %9 = arith.truncf %8 : vector<104x128xf32> to vector<104x128xbf16>
    %c0_6 = arith.constant 0 : index
    %c0_7 = arith.constant 0 : index
    %10 = vector.load %arg4[%c0_6, %c0_7] : memref<128x9xbf16, #tpu.memory_space<vmem>>, vector<128x9xbf16>
    %cst_8 = arith.constant dense<0.000000e+00> : vector<104x9xf32>
    %11 = tpu.matmul %9, %10, %cst_8 {dimension_numbers = #tpu.dot_dimension_numbers<[1], [0], [0], [1], [0, 0, 1, 1], [], []>} : vector<104x128xbf16>, vector<128x9xbf16>, vector<104x9xf32> -> vector<104x9xf32>
    %c0_9 = arith.constant 0 : index
    %c0_10 = arith.constant 0 : index
    %12 = vector.load %arg5[%c0_9, %c0_10] : memref<1x9xf32, #tpu.memory_space<vmem>>, vector<1x9xf32>
    %13 = vector.broadcast %12 : vector<1x9xf32> to vector<104x9xf32>
    %14 = arith.addf %11, %13 : vector<104x9xf32>
    %c0_11 = arith.constant 0 : index
    %c0_12 = arith.constant 0 : index
    %15 = vector.load %arg8[%c0_11, %c0_12] : memref<104x9xf32, #tpu.memory_space<vmem>>, vector<104x9xf32>
    tpu.vector_store %arg8[%c0_11, %c0_12], %14 {strides = array<i32>} : memref<104x9xf32, #tpu.memory_space<vmem>>, vector<104x9xf32>,
    %c0_13 = arith.constant 0 : index
    %c0_14 = arith.constant 0 : index
    %16 = vector.load %arg6[%c0_13, %c0_14] : memref<1x128xf32, #tpu.memory_space<vmem>>, vector<1x128xf32>
    %17 = vector.broadcast %16 : vector<1x128xf32> to vector<104x128xf32>
    %18 = arith.mulf %8, %17 : vector<104x128xf32>
    %cst_15 = arith.constant dense<0.000000e+00> : vector<104xf32>
    %19 = vector.multi_reduction <add>, %18, %cst_15 [1] : vector<104x128xf32> to vector<104xf32>
    %20 = vector.shape_cast %19 : vector<104xf32> to vector<104x1xf32>
    %c0_16 = arith.constant 0 : index
    %c0_17 = arith.constant 0 : index
    %21 = vector.load %arg7[%c0_16, %c0_17] : memref<1x1xf32, #tpu.memory_space<vmem>>, vector<1x1xf32>
    %22 = vector.broadcast %21 : vector<1x1xf32> to vector<104x1xf32>
    %23 = arith.addf %20, %22 : vector<104x1xf32>
    %c0_18 = arith.constant 0 : index
    %c0_19 = arith.constant 0 : index
    %24 = vector.load %arg9[%c0_18, %c0_19] : memref<104x1xf32, #tpu.memory_space<vmem>>, vector<104x1xf32>
    tpu.vector_store %arg9[%c0_18, %c0_19], %23 {strides = array<i32>} : memref<104x1xf32, #tpu.memory_space<vmem>>, vector<104x1xf32>,
    return
  }
  func.func @transform_0(%arg0: i32) -> (i32, i32) {
    %c0_i32 = arith.constant 0 : i32
    %c0_i32_0 = arith.constant 0 : i32
    return %arg0, %c0_i32 : i32, i32
  }
  func.func @transform_1(%arg0: i32) -> (i32, i32) {
    %c0_i32 = arith.constant 0 : i32
    %c0_i32_0 = arith.constant 0 : i32
    %c0_i32_1 = arith.constant 0 : i32
    return %c0_i32, %c0_i32_0 : i32, i32
  }
  func.func @transform_2(%arg0: i32) -> (i32, i32) {
    %c0_i32 = arith.constant 0 : i32
    %c0_i32_0 = arith.constant 0 : i32
    %c0_i32_1 = arith.constant 0 : i32
    return %c0_i32, %c0_i32_0 : i32, i32
  }
  func.func @transform_3(%arg0: i32) -> (i32, i32) {
    %c0_i32 = arith.constant 0 : i32
    %c0_i32_0 = arith.constant 0 : i32
    %c0_i32_1 = arith.constant 0 : i32
    return %c0_i32, %c0_i32_0 : i32, i32
  }
  func.func @transform_4(%arg0: i32) -> (i32, i32) {
    %c0_i32 = arith.constant 0 : i32
    %c0_i32_0 = arith.constant 0 : i32
    %c0_i32_1 = arith.constant 0 : i32
    return %c0_i32, %c0_i32_0 : i32, i32
  }
  func.func @transform_5(%arg0: i32) -> (i32, i32) {
    %c0_i32 = arith.constant 0 : i32
    %c0_i32_0 = arith.constant 0 : i32
    %c0_i32_1 = arith.constant 0 : i32
    return %c0_i32, %c0_i32_0 : i32, i32
  }
  func.func @transform_6(%arg0: i32) -> (i32, i32) {
    %c0_i32 = arith.constant 0 : i32
    %c0_i32_0 = arith.constant 0 : i32
    %c0_i32_1 = arith.constant 0 : i32
    return %c0_i32, %c0_i32_0 : i32, i32
  }
  func.func @transform_7(%arg0: i32) -> (i32, i32) {
    %c0_i32 = arith.constant 0 : i32
    %c0_i32_0 = arith.constant 0 : i32
    return %arg0, %c0_i32 : i32, i32
  }
  func.func @transform_8(%arg0: i32) -> (i32, i32) {
    %c0_i32 = arith.constant 0 : i32
    %c0_i32_0 = arith.constant 0 : i32
    return %arg0, %c0_i32 : i32, i32
  }
}

</mosaic_0001>

<llo_original>
// kernel: tpu_custom_call.1
$region0: #{tpu_custom_call.1}
  #allocation0 [shape = 'u32[]', space=smem, size = 0x4, offset = 0x4, fixed_abs, tag = 'smem constant byte address 0x4 - core index']
  #allocation1 [shape = 'u32[72,128]{1,0:T(1,128)}', space=vmem, size = 0x9000, scoped, tag = 'internal scratch']
  #allocation2 [shape = 'f32[1,1]{1,0:T(1,128)S(1)}', space=vmem, size = 0x200, scoped, tag = 'scoped memory for tpu_custom_call.1']
  %s0 = inlined_call_operand.vmem [shape: f32[200,9], index: 0, kind: input, shape index: {}]
  %s1 = inlined_call_operand.vmem [shape: bf16[9,128], index: 1, kind: input, shape index: {}]
  %s2 = inlined_call_operand.vmem [shape: f32[1,128], index: 2, kind: input, shape index: {}]
  %s3 = inlined_call_operand.vmem [shape: bf16[128,9], index: 3, kind: input, shape index: {}]
  %s4 = inlined_call_operand.vmem [shape: f32[1,9], index: 4, kind: input, shape index: {}]
  %s5 = inlined_call_operand.vmem [shape: f32[1,128], index: 5, kind: input, shape index: {}]
  %s6 = inlined_call_operand.<no memory space> [shape: f32[1,1], index: 6, kind: input, shape index: {}]
  %s7 = inlined_call_operand.vmem [shape: f32[200,9], index: 7, kind: output, shape index: {0}]
  %s8 = inlined_call_operand.vmem [shape: f32[200,1], index: 8, kind: output, shape index: {1}]
  %9 = xla_tuple %s7, %s8
  %s10 = sld [smem:[#allocation0]]
  $region165: #{tpu_custom_call.1} parent=0
    _
  %s12 = ssub.s32 1, %s10
  %s13 = scalar_select 0, %s12, %s10
  %v14 = vstv %s6
  %15 = vst [vmem:[#allocation2] sm:$0x1] %v14
  $region1: #{tpu_custom_call.1} parent=0
    #allocation3 [shape = 'u8[106496]{0}', space=vmem, size = 0x1a000, scoped, tag = 'output window, operand 0']
    #allocation4 [shape = 'u8[106496]{0}', space=vmem, size = 0x1a000, scoped, tag = 'output window, operand 1']
    loop: start=0, step=1, limit=4
    $region2: #{tpu_custom_call.1} parent=1 // loop_pre_header
      _
    $region3: #{tpu_custom_call.1} parent=1 // loop_header
      %s17 = sphi 0, %s21
      %p18 = scmp.ge.s32.totalorder %s17, 4
      %s27 = sphi 0, %s29
      %s30 = sphi 0, %s27
      %s31 = sphi 0, %s30
      %s47 = sphi 0, %s31
      %s51 = sphi 0, %s51
      %s53 = sphi 0, %s51
      %s54 = sphi 0, %s53
      %s68 = sphi 0, %s54
      %s72 = sphi 0, %s72
      %s74 = sphi 0, %s72
      %s75 = sphi 0, %s74
      %s89 = sphi 0, %s75
      %s93 = sphi 0, %s93
      %s95 = sphi 0, %s93
      %s96 = sphi 0, %s95
      %s110 = sphi 0, %s96
      %s114 = sphi 0, %s114
      %s116 = sphi 0, %s114
      %s117 = sphi 0, %s116
      %s131 = sphi 0, %s117
      %s135 = sphi 0, %s135
      %s137 = sphi 0, %s135
      %s138 = sphi 0, %s137
      %s152 = sphi 0, %s138
      %s156 = sphi 0, %s156
      %s158 = sphi 0, %s156
      %s159 = sphi 0, %s158
      %s173 = sphi 0, %s159
      %s179 = sphi 0, %s181
      %s182 = sphi 0, %s179
      %s183 = sphi 0, %s182
      %s199 = sphi 0, %s183
      %s205 = sphi 0, %s207
      %s208 = sphi 0, %s205
      %s209 = sphi 0, %s208
      %s225 = sphi 0, %s209
    $region4: #{tpu_custom_call.1} parent=1 // loop_header_branch
      %20 = sbr.rel (%p18) target = $region8
    $region5: #{tpu_custom_call.1} parent=1 // loop_body
      %s22 = ssub.s32 %s17, 1
      %s23 = ssub.s32 %s17, 2
      %s24 = sadd.s32 %s17, 1
      %s25 = ssub.s32 %s17, %s24
      %p26 = scmp.eq.s32.totalorder %s25, 0
      %s28 = sadd.s32 %s27, 1
      %s29 = scalar_select %p26, %s27, %s28
      %p32 = pneg %p26
      %p33 = scmp.eq.s32.totalorder %s17, 1
      %p34 = por %p32, %p33
      %p35 = scmp.ne.s32.totalorder %s27, %s30
      %p36 = scmp.eq.s32.totalorder %s17, 0
      %p37 = por %p35, %p36
      %p38 = scmp.ne.s32.totalorder %s27, %s30
      %p39 = scmp.eq.s32.totalorder %s22, 1
      %p40 = por %p38, %p39
      %p41 = scmp.ne.s32.totalorder %s30, %s31
      %p42 = scmp.eq.s32.totalorder %s22, 0
      %p43 = por %p41, %p42
      %p44 = scmp.ne.s32.totalorder %s30, %s31
      %p45 = scmp.eq.s32.totalorder %s23, 1
      %p46 = por %p44, %p45
      %p48 = scmp.ne.s32.totalorder %s31, %s47
      %p49 = scmp.eq.s32.totalorder %s23, 0
      %p50 = por %p48, %p49
      %s52 = sadd.s32 %s51, 1
      %p55 = scmp.eq.s32.totalorder %s17, 1
      %p56 = scmp.ne.s32.totalorder %s51, %s53
      %p57 = scmp.eq.s32.totalorder %s17, 0
      %p58 = por %p56, %p57
      %p59 = scmp.ne.s32.totalorder %s51, %s53
      %p60 = scmp.eq.s32.totalorder %s22, 1
      %p61 = por %p59, %p60
      %p62 = scmp.ne.s32.totalorder %s53, %s54
      %p63 = scmp.eq.s32.totalorder %s22, 0
      %p64 = por %p62, %p63
      %p65 = scmp.ne.s32.totalorder %s53, %s54
      %p66 = scmp.eq.s32.totalorder %s23, 1
      %p67 = por %p65, %p66
      %p69 = scmp.ne.s32.totalorder %s54, %s68
      %p70 = scmp.eq.s32.totalorder %s23, 0
      %p71 = por %p69, %p70
      %s73 = sadd.s32 %s72, 1
      %p76 = scmp.eq.s32.totalorder %s17, 1
      %p77 = scmp.ne.s32.totalorder %s72, %s74
      %p78 = scmp.eq.s32.totalorder %s17, 0
      %p79 = por %p77, %p78
      %p80 = scmp.ne.s32.totalorder %s72, %s74
      %p81 = scmp.eq.s32.totalorder %s22, 1
      %p82 = por %p80, %p81
      %p83 = scmp.ne.s32.totalorder %s74, %s75
      %p84 = scmp.eq.s32.totalorder %s22, 0
      %p85 = por %p83, %p84
      %p86 = scmp.ne.s32.totalorder %s74, %s75
      %p87 = scmp.eq.s32.totalorder %s23, 1
      %p88 = por %p86, %p87
      %p90 = scmp.ne.s32.totalorder %s75, %s89
      %p91 = scmp.eq.s32.totalorder %s23, 0
      %p92 = por %p90, %p91
      %s94 = sadd.s32 %s93, 1
      %p97 = scmp.eq.s32.totalorder %s17, 1
      %p98 = scmp.ne.s32.totalorder %s93, %s95
      %p99 = scmp.eq.s32.totalorder %s17, 0
      %p100 = por %p98, %p99
      %p101 = scmp.ne.s32.totalorder %s93, %s95
      %p102 = scmp.eq.s32.totalorder %s22, 1
      %p103 = por %p101, %p102
      %p104 = scmp.ne.s32.totalorder %s95, %s96
      %p105 = scmp.eq.s32.totalorder %s22, 0
      %p106 = por %p104, %p105
      %p107 = scmp.ne.s32.totalorder %s95, %s96
      %p108 = scmp.eq.s32.totalorder %s23, 1
      %p109 = por %p107, %p108
      %p111 = scmp.ne.s32.totalorder %s96, %s110
      %p112 = scmp.eq.s32.totalorder %s23, 0
      %p113 = por %p111, %p112
      %s115 = sadd.s32 %s114, 1
      %p118 = scmp.eq.s32.totalorder %s17, 1
      %p119 = scmp.ne.s32.totalorder %s114, %s116
      %p120 = scmp.eq.s32.totalorder %s17, 0
      %p121 = por %p119, %p120
      %p122 = scmp.ne.s32.totalorder %s114, %s116
      %p123 = scmp.eq.s32.totalorder %s22, 1
      %p124 = por %p122, %p123
      %p125 = scmp.ne.s32.totalorder %s116, %s117
      %p126 = scmp.eq.s32.totalorder %s22, 0
      %p127 = por %p125, %p126
      %p128 = scmp.ne.s32.totalorder %s116, %s117
      %p129 = scmp.eq.s32.totalorder %s23, 1
      %p130 = por %p128, %p129
      %p132 = scmp.ne.s32.totalorder %s117, %s131
      %p133 = scmp.eq.s32.totalorder %s23, 0
      %p134 = por %p132, %p133
      %s136 = sadd.s32 %s135, 1
      %p139 = scmp.eq.s32.totalorder %s17, 1
      %p140 = scmp.ne.s32.totalorder %s135, %s137
      %p141 = scmp.eq.s32.totalorder %s17, 0
      %p142 = por %p140, %p141
      %p143 = scmp.ne.s32.totalorder %s135, %s137
      %p144 = scmp.eq.s32.totalorder %s22, 1
      %p145 = por %p143, %p144
      %p146 = scmp.ne.s32.totalorder %s137, %s138
      %p147 = scmp.eq.s32.totalorder %s22, 0
      %p148 = por %p146, %p147
      %p149 = scmp.ne.s32.totalorder %s137, %s138
      %p150 = scmp.eq.s32.totalorder %s23, 1
      %p151 = por %p149, %p150
      %p153 = scmp.ne.s32.totalorder %s138, %s152
      %p154 = scmp.eq.s32.totalorder %s23, 0
      %p155 = por %p153, %p154
      %s157 = sadd.s32 %s156, 1
      %p160 = scmp.eq.s32.totalorder %s17, 1
      %p161 = scmp.ne.s32.totalorder %s156, %s158
      %p162 = scmp.eq.s32.totalorder %s17, 0
      %p163 = por %p161, %p162
      %p164 = scmp.ne.s32.totalorder %s156, %s158
      %p165 = scmp.eq.s32.totalorder %s22, 1
      %p166 = por %p164, %p165
      %p167 = scmp.ne.s32.totalorder %s158, %s159
      %p168 = scmp.eq.s32.totalorder %s22, 0
      %p169 = por %p167, %p168
      %p170 = scmp.ne.s32.totalorder %s158, %s159
      %p171 = scmp.eq.s32.totalorder %s23, 1
      %p172 = por %p170, %p171
      %p174 = scmp.ne.s32.totalorder %s159, %s173
      %p175 = scmp.eq.s32.totalorder %s23, 0
      %p176 = por %p174, %p175
      %s177 = ssub.s32 %s17, %s24
      %p178 = scmp.eq.s32.totalorder %s177, 0
      %s180 = sadd.s32 %s179, 1
      %s181 = scalar_select %p178, %s179, %s180
      %p184 = pneg %p178
      %p185 = scmp.eq.s32.totalorder %s17, 1
      %p186 = por %p184, %p185
      %p187 = scmp.ne.s32.totalorder %s179, %s182
      %p188 = scmp.eq.s32.totalorder %s17, 0
      %p189 = por %p187, %p188
      %p190 = scmp.ne.s32.totalorder %s179, %s182
      %p191 = scmp.eq.s32.totalorder %s22, 1
      %p192 = por %p190, %p191
      %p193 = scmp.ne.s32.totalorder %s182, %s183
      %p194 = scmp.eq.s32.totalorder %s22, 0
      %p195 = por %p193, %p194
      %p196 = scmp.ne.s32.totalorder %s182, %s183
      %p197 = scmp.eq.s32.totalorder %s23, 1
      %p198 = por %p196, %p197
      %p200 = scmp.ne.s32.totalorder %s183, %s199
      %p201 = scmp.eq.s32.totalorder %s23, 0
      %p202 = por %p200, %p201
      %s203 = ssub.s32 %s17, %s24
      %p204 = scmp.eq.s32.totalorder %s203, 0
      %s206 = sadd.s32 %s205, 1
      %s207 = scalar_select %p204, %s205, %s206
      %p210 = pneg %p204
      %p211 = scmp.eq.s32.totalorder %s17, 1
      %p212 = por %p210, %p211
      %p213 = scmp.ne.s32.totalorder %s205, %s208
      %p214 = scmp.eq.s32.totalorder %s17, 0
      %p215 = por %p213, %p214
      %p216 = scmp.ne.s32.totalorder %s205, %s208
      %p217 = scmp.eq.s32.totalorder %s22, 1
      %p218 = por %p216, %p217
      %p219 = scmp.ne.s32.totalorder %s208, %s209
      %p220 = scmp.eq.s32.totalorder %s22, 0
      %p221 = por %p219, %p220
      %p222 = scmp.ne.s32.totalorder %s208, %s209
      %p223 = scmp.eq.s32.totalorder %s23, 1
      %p224 = por %p222, %p223
      %p226 = scmp.ne.s32.totalorder %s209, %s225
      %p227 = scmp.eq.s32.totalorder %s23, 0
      %p228 = por %p226, %p227
      %p229 = scmp.le.s32.totalorder 1, %s17
      %p230 = scmp.lt.s32.totalorder %s17, 3
      %p231 = pnand %p229, %p230
      %p232 = pneg %p231
      // Predicated region
      $region9: #{tpu_custom_call.1} parent=5 // pred_check
        _
      $region10: #{tpu_custom_call.1} parent=5 // pred_check_branch
        %234 = sbr.rel (%p231) target = $region12
      $region11: #{tpu_custom_call.1} parent=5 // pred_region
        %s235 = ssub.s32 %s17, 1
        // Predicated region
        $region13: #{tpu_custom_call.1} parent=11 // pred_check
          %p236 = pneg %p64
        $region14: #{tpu_custom_call.1} parent=11 // pred_check_branch
          %238 = sbr.rel (%p236) target = $region16
        $region15: #{tpu_custom_call.1} parent=11 // pred_region
          _
        $region16: #{tpu_custom_call.1} parent=11 // pred_fallthru
          _
        // Predicated region
        $region17: #{tpu_custom_call.1} parent=11 // pred_check
          %p239 = pneg %p85
        $region18: #{tpu_custom_call.1} parent=11 // pred_check_branch
          %241 = sbr.rel (%p239) target = $region20
        $region19: #{tpu_custom_call.1} parent=11 // pred_region
          _
        $region20: #{tpu_custom_call.1} parent=11 // pred_fallthru
          _
        // Predicated region
        $region21: #{tpu_custom_call.1} parent=11 // pred_check
          %p242 = pneg %p106
        $region22: #{tpu_custom_call.1} parent=11 // pred_check_branch
          %244 = sbr.rel (%p242) target = $region24
        $region23: #{tpu_custom_call.1} parent=11 // pred_region
          _
        $region24: #{tpu_custom_call.1} parent=11 // pred_fallthru
          _
        // Predicated region
        $region25: #{tpu_custom_call.1} parent=11 // pred_check
          %p245 = pneg %p127
        $region26: #{tpu_custom_call.1} parent=11 // pred_check_branch
          %247 = sbr.rel (%p245) target = $region28
        $region27: #{tpu_custom_call.1} parent=11 // pred_region
          _
        $region28: #{tpu_custom_call.1} parent=11 // pred_fallthru
          _
        // Predicated region
        $region29: #{tpu_custom_call.1} parent=11 // pred_check
          %p248 = pneg %p148
        $region30: #{tpu_custom_call.1} parent=11 // pred_check_branch
          %250 = sbr.rel (%p248) target = $region32
        $region31: #{tpu_custom_call.1} parent=11 // pred_region
          _
        $region32: #{tpu_custom_call.1} parent=11 // pred_fallthru
          _
        // Predicated region
        $region33: #{tpu_custom_call.1} parent=11 // pred_check
          %p251 = pneg %p169
        $region34: #{tpu_custom_call.1} parent=11 // pred_check_branch
          %253 = sbr.rel (%p251) target = $region36
        $region35: #{tpu_custom_call.1} parent=11 // pred_region
          _
        $region36: #{tpu_custom_call.1} parent=11 // pred_fallthru
          _
      $region12: #{tpu_custom_call.1} parent=5 // pred_fallthru
        _
      %p254 = scmp.lt.s32.totalorder %s17, 2
      // Predicated region
      $region37: #{tpu_custom_call.1} parent=5 // pred_check
        %p255 = pneg %p254
      $region38: #{tpu_custom_call.1} parent=5 // pred_check_branch
        %257 = sbr.rel (%p255) target = $region40
      $region39: #{tpu_custom_call.1} parent=5 // pred_region
        // Predicated region
        $region41: #{tpu_custom_call.1} parent=39 // pred_check
          %p258 = pneg %p37
        $region42: #{tpu_custom_call.1} parent=39 // pred_check_branch
          %260 = sbr.rel (%p258) target = $region44
        $region43: #{tpu_custom_call.1} parent=39 // pred_region
          %s261 = smul.u32 13, %s17
          %s262 = ssub.s32 25, %s261
          %p263 = scmp.lt.s32.totalorder %s262, 13
          %s264 = scalar_select %p263, %s262, 13
          %s265 = smul.u32 8, %s264
          %p266 = scmp.lt.s32.totalorder %s261, 24
          %s267 = scalar_select %p266, %s261, 24
          %s268 = smul.addr %s267, 8
          %s269 = scalar_lea.vmem %s0, %s268
          %s270 = smul.u32 13, %s17
          %s271 = ssub.s32 25, %s270
          %p272 = scmp.lt.s32.totalorder %s271, 13
          %s273 = scalar_select %p272, %s271, 13
          %s274 = smul.u32 8, %s273
        $region44: #{tpu_custom_call.1} parent=39 // pred_fallthru
          _
      $region40: #{tpu_custom_call.1} parent=5 // pred_fallthru
        _
      %p275 = scmp.le.s32.totalorder 1, %s17
      %p276 = scmp.lt.s32.totalorder %s17, 3
      %p277 = pnand %p275, %p276
      %p278 = pneg %p277
      // Predicated region
      $region45: #{tpu_custom_call.1} parent=5 // pred_check
        _
      $region46: #{tpu_custom_call.1} parent=5 // pred_check_branch
        %280 = sbr.rel (%p277) target = $region48
      $region47: #{tpu_custom_call.1} parent=5 // pred_region
        %s281 = ssub.s32 %s17, 1
        %s282 = smul.u32 13, %s22
        %s283 = ssub.s32 25, %s282
        %p284 = scmp.lt.s32.totalorder %s283, 13
        %s285 = scalar_select %p284, %s283, 13
        %s286 = smul.u32 8, %s285
        %p287 = scmp.lt.s32.totalorder %s282, 24
        %s288 = scalar_select %p287, %s282, 24
        %s289 = smul.addr %s288, 8
        %s290 = scalar_lea.vmem %s0, %s289
        %p291 = pneg %p43
        %p292 = pneg %p40
        %p293 = pneg %p64
        %p294 = pneg %p61
        %p295 = pneg %p85
        %p296 = pneg %p82
        %p297 = pneg %p106
        %p298 = pneg %p103
        %p299 = pneg %p127
        %p300 = pneg %p124
        %p301 = pneg %p148
        %p302 = pneg %p145
        %p303 = pneg %p169
        %p304 = pneg %p166
        %p305 = pneg %p195
        %p306 = pneg %p192
        %s307 = sand.u32 %s182, 1
        %s308 = sand.u32 %s182, 1
        %s309 = smul.addr %s308, 104
        %s310 = scalar_lea.vmem [#allocation3], %s309
        %p311 = pneg %p221
        %p312 = pneg %p218
        %s313 = sand.u32 %s208, 1
        %s314 = sand.u32 %s208, 1
        %s315 = smul.addr %s314, 104
        %s316 = scalar_lea.vmem [#allocation4], %s315
        %s317 = smul.u32 13, %s22
        %s318 = ssub.s32 25, %s317
        %p319 = scmp.lt.s32.totalorder %s318, 13
        %s320 = scalar_select %p319, %s318, 13
        %s321 = smul.u32 8, %s320
        %p322 = scmp.lt.s32.totalorder %s317, 24
        %s323 = scalar_select %p322, %s317, 24
        %s324 = smul.addr %s323, 8
        %s325 = scalar_lea.vmem %s0, %s324
        %s326 = smul.u32 13, %s22
        %s327 = ssub.s32 25, %s326
        %p328 = scmp.lt.s32.totalorder %s327, 13
        %s329 = scalar_select %p328, %s327, 13
        %s330 = smul.u32 8, %s329
        %s331 = smul.u32 13, %s22
        %s332 = ssub.s32 25, %s331
        %p333 = scmp.lt.s32.totalorder %s332, 13
        %s334 = scalar_select %p333, %s332, 13
        %s335 = smul.u32 8, %s334
        %s336 = smul.u32 13, %s22
        %s337 = ssub.s32 25, %s336
        %p338 = scmp.lt.s32.totalorder %s337, 13
        %s339 = scalar_select %p338, %s337, 13
        %s340 = smul.u32 8, %s339
        %v342 = vld [vmem:[%s325] sm:$0xff]
        %v343 = vld [vmem:[%s325 + $0x8] sm:$0xff]
        %v344 = vld [vmem:[%s325 + $0x10] sm:$0xff]
        %v345 = vld [vmem:[%s325 + $0x18] sm:$0xff]
        %v346 = vld [vmem:[%s325 + $0x20] sm:$0xff]
        %v347 = vld [vmem:[%s325 + $0x28] sm:$0xff]
        %v348 = vld [vmem:[%s325 + $0x30] sm:$0xff]
        %v349 = vld [vmem:[%s325 + $0x38] sm:$0xff]
        %v350 = vld [vmem:[%s325 + $0x40] sm:$0xff]
        %v351 = vld [vmem:[%s325 + $0x48] sm:$0xff]
        %v352 = vld [vmem:[%s325 + $0x50] sm:$0xff]
        %v353 = vld [vmem:[%s325 + $0x58] sm:$0xff]
        %v354 = vld [vmem:[%s325 + $0x60] sm:$0xff]
        %v355 = vpack.c.bf16 %v343, %v342
        %v356 = vpack.c.bf16 %v345, %v344
        %v357 = vpack.c.bf16 %v347, %v346
        %v358 = vpack.c.bf16 %v349, %v348
        %v359 = vpack.c.bf16 %v351, %v350
        %v360 = vpack.c.bf16 %v353, %v352
        %v361 = vpack.c.bf16 %v354, %v354
        %v362 = vld [vmem:[%s1] sm:$0xf]
        %v363 = vld [vmem:[%s1 + $0x4] sm:$0x1]
        %v364 = vld [vmem:[%s2] sm:$0x1]
        %v366 = vperm.slane %v364, 0
        %v370 = vunpack.c.l.b16 %v362
        %v371 = vunpack.c.l.b16 %v363
        %v372 = vpack.c.b16 %v371, %v370
        %vm373 = vcmask 72704
        %v375 = vsel %vm373, %v355, 0
        %v378 = vsel %vm373, %v356, 0
        %v381 = vsel %vm373, %v357, 0
        %v384 = vsel %vm373, %v358, 0
        %v387 = vsel %vm373, %v359, 0
        %v390 = vsel %vm373, %v360, 0
        %v393 = vsel %vm373, %v361, 0
        %vm395 = vcmask 1043456
        %vm396 = vcmask 1044480
        %v397 = vsel %vm395, 4294967295, 65535
        %v398 = vsel %vm396, %v397, 0
        %v400 = vand.u32 %v372, %v398
        %402 = vmatpush.bf16.msra.mxu0 0
        %403 = vmatpush.bf16.msra.mxu0 0
        %404 = vmatpush.bf16.msra.mxu0 0
        %405 = vmatpush.bf16.msra.mxu0 0
        %406 = vmatpush.bf16.msra.mxu0 0
        %407 = vmatpush.bf16.msra.mxu0 0
        %408 = vmatpush.bf16.msra.mxu0 0
        %409 = vmatpush.bf16.msra.mxu0 %v400
        %410 = vmatmul.bf16.gmra.mxu0 %v375
        %v411 = vpop.f32.mrf.mxu0
        %v412 = vadd.f32 %v366, %v411
        %v413 = vpop.f32.mrf.mxu0
        %v414 = vadd.f32 %v366, %v413
        %415 = vmatmul.bf16.gmra.mxu0 %v378
        %v416 = vpop.f32.mrf.mxu0
        %v417 = vadd.f32 %v366, %v416
        %v418 = vpop.f32.mrf.mxu0
        %v419 = vadd.f32 %v366, %v418
        %420 = vmatmul.bf16.gmra.mxu0 %v381
        %v421 = vpop.f32.mrf.mxu0
        %v422 = vadd.f32 %v366, %v421
        %v423 = vpop.f32.mrf.mxu0
        %v424 = vadd.f32 %v366, %v423
        %425 = vmatmul.bf16.gmra.mxu0 %v384
        %v426 = vpop.f32.mrf.mxu0
        %v427 = vadd.f32 %v366, %v426
        %v428 = vpop.f32.mrf.mxu0
        %v429 = vadd.f32 %v366, %v428
        %430 = vmatmul.bf16.gmra.mxu0 %v387
        %v431 = vpop.f32.mrf.mxu0
        %v432 = vadd.f32 %v366, %v431
        %v433 = vpop.f32.mrf.mxu0
        %v434 = vadd.f32 %v366, %v433
        %435 = vmatmul.bf16.gmra.mxu0 %v390
        %v436 = vpop.f32.mrf.mxu0
        %v437 = vadd.f32 %v366, %v436
        %v438 = vpop.f32.mrf.mxu0
        %v439 = vadd.f32 %v366, %v438
        %440 = vmatmul.bf16.gmra.mxu0 %v393
        %v441 = vpop.f32.mrf.mxu0
        %v442 = vadd.f32 %v366, %v441
        %v443 = vpop.f32.mrf.mxu0
        %444 = vdwg.mxu0
        %v445 = vmax.f32 %v412, 0.0
        %v446 = vmax.f32 %v414, 0.0
        %v447 = vmax.f32 %v417, 0.0
        %v448 = vmax.f32 %v419, 0.0
        %v449 = vmax.f32 %v422, 0.0
        %v450 = vmax.f32 %v424, 0.0
        %v451 = vmax.f32 %v427, 0.0
        %v452 = vmax.f32 %v429, 0.0
        %v453 = vmax.f32 %v432, 0.0
        %v454 = vmax.f32 %v434, 0.0
        %v455 = vmax.f32 %v437, 0.0
        %v456 = vmax.f32 %v439, 0.0
        %v457 = vmax.f32 %v442, 0.0
        %v458 = vpack.c.bf16 %v446, %v445
        %v459 = vpack.c.bf16 %v448, %v447
        %v460 = vpack.c.bf16 %v450, %v449
        %v461 = vpack.c.bf16 %v452, %v451
        %v462 = vpack.c.bf16 %v454, %v453
        %v463 = vpack.c.bf16 %v456, %v455
        %v464 = vpack.c.bf16 %v457, %v457
        %v465 = vld [vmem:[%s3] sm:$0xf]
        %v466 = vld [vmem:[%s3 + $0x4] sm:$0xf]
        %v467 = vld [vmem:[%s3 + $0x8] sm:$0xf]
        %v468 = vld [vmem:[%s3 + $0xc] sm:$0xf]
        %v469 = vld [vmem:[%s3 + $0x10] sm:$0xf]
        %v470 = vld [vmem:[%s3 + $0x14] sm:$0xf]
        %v471 = vld [vmem:[%s3 + $0x18] sm:$0xf]
        %v472 = vld [vmem:[%s3 + $0x1c] sm:$0xf]
        %v473 = vld [vmem:[%s3 + $0x20] sm:$0xf]
        %v474 = vld [vmem:[%s3 + $0x24] sm:$0xf]
        %v475 = vld [vmem:[%s3 + $0x28] sm:$0xf]
        %v476 = vld [vmem:[%s3 + $0x2c] sm:$0xf]
        %v477 = vld [vmem:[%s3 + $0x30] sm:$0xf]
        %v478 = vld [vmem:[%s3 + $0x34] sm:$0xf]
        %v479 = vld [vmem:[%s3 + $0x38] sm:$0xf]
        %v480 = vld [vmem:[%s3 + $0x3c] sm:$0xf]
        %v481 = vld [vmem:[%s4] sm:$0x1]
        %v483 = vperm.slane %v481, 0
        %v501 = vunpack.c.l.b16 %v465
        %v502 = vunpack.c.l.b16 %v466
        %v503 = vunpack.c.l.b16 %v467
        %v504 = vunpack.c.l.b16 %v468
        %v505 = vunpack.c.l.b16 %v469
        %v506 = vunpack.c.l.b16 %v470
        %v507 = vunpack.c.l.b16 %v471
        %v508 = vunpack.c.l.b16 %v472
        %v509 = vunpack.c.l.b16 %v473
        %v510 = vunpack.c.l.b16 %v474
        %v511 = vunpack.c.l.b16 %v475
        %v512 = vunpack.c.l.b16 %v476
        %v513 = vunpack.c.l.b16 %v477
        %v514 = vunpack.c.l.b16 %v478
        %v515 = vunpack.c.l.b16 %v479
        %v516 = vunpack.c.l.b16 %v480
        %v517 = vpack.c.b16 %v502, %v501
        %v518 = vpack.c.b16 %v504, %v503
        %v519 = vpack.c.b16 %v506, %v505
        %v520 = vpack.c.b16 %v508, %v507
        %v521 = vpack.c.b16 %v510, %v509
        %v522 = vpack.c.b16 %v512, %v511
        %v523 = vpack.c.b16 %v514, %v513
        %v524 = vpack.c.b16 %v516, %v515
        %533 = vmatpush.bf16.msra.mxu0 %v524
        %534 = vmatpush.bf16.msra.mxu0 %v523
        %535 = vmatpush.bf16.msra.mxu0 %v522
        %536 = vmatpush.bf16.msra.mxu0 %v521
        %537 = vmatpush.bf16.msra.mxu0 %v520
        %538 = vmatpush.bf16.msra.mxu0 %v519
        %539 = vmatpush.bf16.msra.mxu0 %v518
        %540 = vmatpush.bf16.msra.mxu0 %v517
        %541 = vmatmul.bf16.gmra.mxu0 %v458
        %v542 = vpop.f32.mrf.mxu0
        %v543 = vadd.f32 %v483, %v542
        %v544 = vpop.f32.mrf.mxu0
        %v545 = vadd.f32 %v483, %v544
        %546 = vmatmul.bf16.gmra.mxu0 %v459
        %v547 = vpop.f32.mrf.mxu0
        %v548 = vadd.f32 %v483, %v547
        %v549 = vpop.f32.mrf.mxu0
        %v550 = vadd.f32 %v483, %v549
        %551 = vmatmul.bf16.gmra.mxu0 %v460
        %v552 = vpop.f32.mrf.mxu0
        %v553 = vadd.f32 %v483, %v552
        %v554 = vpop.f32.mrf.mxu0
        %v555 = vadd.f32 %v483, %v554
        %556 = vmatmul.bf16.gmra.mxu0 %v461
        %v557 = vpop.f32.mrf.mxu0
        %v558 = vadd.f32 %v483, %v557
        %v559 = vpop.f32.mrf.mxu0
        %v560 = vadd.f32 %v483, %v559
        %561 = vmatmul.bf16.gmra.mxu0 %v462
        %v562 = vpop.f32.mrf.mxu0
        %v563 = vadd.f32 %v483, %v562
        %v564 = vpop.f32.mrf.mxu0
        %v565 = vadd.f32 %v483, %v564
        %566 = vmatmul.bf16.gmra.mxu0 %v463
        %v567 = vpop.f32.mrf.mxu0
        %v568 = vadd.f32 %v483, %v567
        %v569 = vpop.f32.mrf.mxu0
        %v570 = vadd.f32 %v483, %v569
        %571 = vmatmul.bf16.gmra.mxu0 %v464
        %v572 = vpop.f32.mrf.mxu0
        %v573 = vadd.f32 %v483, %v572
        %v574 = vpop.f32.mrf.mxu0
        %575 = vdwg.mxu0
        %576 = vst.msk [vmem:[%s310] sm:$0xff] %vm373, %v543
        %577 = vst.msk [vmem:[%s310 + $0x8] sm:$0xff] %vm373, %v545
        %578 = vst.msk [vmem:[%s310 + $0x10] sm:$0xff] %vm373, %v548
        %579 = vst.msk [vmem:[%s310 + $0x18] sm:$0xff] %vm373, %v550
        %580 = vst.msk [vmem:[%s310 + $0x20] sm:$0xff] %vm373, %v553
        %581 = vst.msk [vmem:[%s310 + $0x28] sm:$0xff] %vm373, %v555
        %582 = vst.msk [vmem:[%s310 + $0x30] sm:$0xff] %vm373, %v558
        %583 = vst.msk [vmem:[%s310 + $0x38] sm:$0xff] %vm373, %v560
        %584 = vst.msk [vmem:[%s310 + $0x40] sm:$0xff] %vm373, %v563
        %585 = vst.msk [vmem:[%s310 + $0x48] sm:$0xff] %vm373, %v565
        %586 = vst.msk [vmem:[%s310 + $0x50] sm:$0xff] %vm373, %v568
        %587 = vst.msk [vmem:[%s310 + $0x58] sm:$0xff] %vm373, %v570
        %588 = vst.msk [vmem:[%s310 + $0x60] sm:$0xff] %vm373, %v573
        %v589 = vld [vmem:[%s5] sm:$0x1]
        %v591 = vperm.slane %v589, 0
        %v593 = vmul.f32 %v445, %v591
        %v594 = vmul.f32 %v446, %v591
        %v595 = vmul.f32 %v447, %v591
        %v596 = vmul.f32 %v448, %v591
        %v597 = vmul.f32 %v449, %v591
        %v598 = vmul.f32 %v450, %v591
        %v599 = vmul.f32 %v451, %v591
        %v600 = vmul.f32 %v452, %v591
        %v601 = vmul.f32 %v453, %v591
        %v602 = vmul.f32 %v454, %v591
        %v603 = vmul.f32 %v455, %v591
        %v604 = vmul.f32 %v456, %v591
        %v605 = vmul.f32 %v457, %v591
        %606 = vadd.xlane.f32.xlu0 %v593
        %v607 = vpop.xlane.xlu0 %606
        %608 = vadd.xlane.f32.xlu0 %v594
        %v609 = vpop.xlane.xlu0 %608
        %610 = vadd.xlane.f32.xlu0 %v595
        %v611 = vpop.xlane.xlu0 %610
        %612 = vadd.xlane.f32.xlu0 %v596
        %v613 = vpop.xlane.xlu0 %612
        %614 = vadd.xlane.f32.xlu0 %v597
        %v615 = vpop.xlane.xlu0 %614
        %616 = vadd.xlane.f32.xlu0 %v598
        %v617 = vpop.xlane.xlu0 %616
        %618 = vadd.xlane.f32.xlu0 %v599
        %v619 = vpop.xlane.xlu0 %618
        %620 = vadd.xlane.f32.xlu0 %v600
        %v621 = vpop.xlane.xlu0 %620
        %622 = vadd.xlane.f32.xlu0 %v601
        %v623 = vpop.xlane.xlu0 %622
        %624 = vadd.xlane.f32.xlu0 %v602
        %v625 = vpop.xlane.xlu0 %624
        %626 = vadd.xlane.f32.xlu0 %v603
        %v627 = vpop.xlane.xlu0 %626
        %628 = vadd.xlane.f32.xlu0 %v604
        %v629 = vpop.xlane.xlu0 %628
        %630 = vadd.xlane.f32.xlu0 %v605
        %v631 = vpop.xlane.xlu0 %630
        %v632 = vld [vmem:[#allocation2] sm:$0x1]
        %v634 = vperm.slane %v632, 0
        %v636 = vadd.f32 %v607, %v634
        %v637 = vadd.f32 %v609, %v634
        %v638 = vadd.f32 %v611, %v634
        %v639 = vadd.f32 %v613, %v634
        %v640 = vadd.f32 %v615, %v634
        %v641 = vadd.f32 %v617, %v634
        %v642 = vadd.f32 %v619, %v634
        %v643 = vadd.f32 %v621, %v634
        %v644 = vadd.f32 %v623, %v634
        %v645 = vadd.f32 %v625, %v634
        %v646 = vadd.f32 %v627, %v634
        %v647 = vadd.f32 %v629, %v634
        %v648 = vadd.f32 %v631, %v634
        %vm649 = vcmask 7168
        %650 = vst.msk [vmem:[%s316] sm:$0xff] %vm649, %v636
        %651 = vst.msk [vmem:[%s316 + $0x8] sm:$0xff] %vm649, %v637
        %652 = vst.msk [vmem:[%s316 + $0x10] sm:$0xff] %vm649, %v638
        %653 = vst.msk [vmem:[%s316 + $0x18] sm:$0xff] %vm649, %v639
        %654 = vst.msk [vmem:[%s316 + $0x20] sm:$0xff] %vm649, %v640
        %655 = vst.msk [vmem:[%s316 + $0x28] sm:$0xff] %vm649, %v641
        %656 = vst.msk [vmem:[%s316 + $0x30] sm:$0xff] %vm649, %v642
        %657 = vst.msk [vmem:[%s316 + $0x38] sm:$0xff] %vm649, %v643
        %658 = vst.msk [vmem:[%s316 + $0x40] sm:$0xff] %vm649, %v644
        %659 = vst.msk [vmem:[%s316 + $0x48] sm:$0xff] %vm649, %v645
        %660 = vst.msk [vmem:[%s316 + $0x50] sm:$0xff] %vm649, %v646
        %661 = vst.msk [vmem:[%s316 + $0x58] sm:$0xff] %vm649, %v647
        %662 = vst.msk [vmem:[%s316 + $0x60] sm:$0xff] %vm649, %v648
        %s663 = sand.u32 %s182, 1
        %s664 = sand.u32 %s182, 1
        %s665 = smul.addr %s664, 104
        %s666 = scalar_lea.vmem [#allocation3], %s665
        %s667 = sand.u32 %s208, 1
        %s668 = sand.u32 %s208, 1
        %s669 = smul.addr %s668, 104
        %s670 = scalar_lea.vmem [#allocation4], %s669
        // Predicated region
        $region49: #{tpu_custom_call.1} parent=47 // pred_check
          %p671 = pneg %p192
        $region50: #{tpu_custom_call.1} parent=47 // pred_check_branch
          %673 = sbr.rel (%p671) target = $region52
        $region51: #{tpu_custom_call.1} parent=47 // pred_region
          %s674 = smul.u32 13, %s22
          %s675 = ssub.s32 25, %s674
          %p676 = scmp.lt.s32.totalorder %s675, 13
          %s677 = scalar_select %p676, %s675, 13
          %s678 = smul.u32 8, %s677
          %p679 = scmp.ne.s32.totalorder 0, %s678
          %s680 = smul.addr %s674, 8
          %s681 = scalar_lea.vmem %s7, %s680
          // Predicated region
          $region53: #{tpu_custom_call.1} parent=51 // pred_check
            %p682 = pneg %p679
          $region54: #{tpu_custom_call.1} parent=51 // pred_check_branch
            %684 = sbr.rel (%p682) target = $region56
          $region55: #{tpu_custom_call.1} parent=51 // pred_region
            // Predicated region
            $region57: #{tpu_custom_call.1} parent=55 // pred_check
              _
            $region58: #{tpu_custom_call.1} parent=55 // pred_check_branch
              %686 = sbr.rel (0) target = $region60
            $region59: #{tpu_custom_call.1} parent=55 // pred_region
              // Predicated region
              $region79: #{tpu_custom_call.1} parent=59 // pred_check
                _
              $region80: #{tpu_custom_call.1} parent=59 // pred_check_branch
                %761 = sbr.rel (0) target = $region82
              $region81: #{tpu_custom_call.1} parent=59 // pred_region
                %s762 = sdiv.u32.pop %s677, 13
                %s763 = srem.u32.pop %s677, 13
                // While loop
                $region83: #{tpu_custom_call.1} parent=81 // loop_pre_header
                  _
                $region84: #{tpu_custom_call.1} parent=81 // loop_header
                  %s765 = sphi 0, %s767
                  %p766 = scmp.ge.s32.totalorder %s765, %s762
                  %s770 = sphi 0, %s801
                  %s771 = sphi %s666, %s804
                  %s772 = sphi %s681, %s805
                $region85: #{tpu_custom_call.1} parent=81 // loop_header_branch
                  %769 = sbr.rel (%p766) target = $region89
                $region86: #{tpu_custom_call.1} parent=81 // loop_body
                  %v773 = vld [vmem:[%s771] sm:$0xff]
                  %774 = vst [vmem:[%s772] sm:$0xff] %v773
                  %v775 = vld [vmem:[%s771 + $0x8] sm:$0xff]
                  %776 = vst [vmem:[%s772 + $0x8] sm:$0xff] %v775
                  %v777 = vld [vmem:[%s771 + $0x10] sm:$0xff]
                  %778 = vst [vmem:[%s772 + $0x10] sm:$0xff] %v777
                  %v779 = vld [vmem:[%s771 + $0x18] sm:$0xff]
                  %780 = vst [vmem:[%s772 + $0x18] sm:$0xff] %v779
                  %v781 = vld [vmem:[%s771 + $0x20] sm:$0xff]
                  %782 = vst [vmem:[%s772 + $0x20] sm:$0xff] %v781
                  %v783 = vld [vmem:[%s771 + $0x28] sm:$0xff]
                  %784 = vst [vmem:[%s772 + $0x28] sm:$0xff] %v783
                  %v785 = vld [vmem:[%s771 + $0x30] sm:$0xff]
                  %786 = vst [vmem:[%s772 + $0x30] sm:$0xff] %v785
                  %v787 = vld [vmem:[%s771 + $0x38] sm:$0xff]
                  %788 = vst [vmem:[%s772 + $0x38] sm:$0xff] %v787
                  %v789 = vld [vmem:[%s771 + $0x40] sm:$0xff]
                  %790 = vst [vmem:[%s772 + $0x40] sm:$0xff] %v789
                  %v791 = vld [vmem:[%s771 + $0x48] sm:$0xff]
                  %792 = vst [vmem:[%s772 + $0x48] sm:$0xff] %v791
                  %v793 = vld [vmem:[%s771 + $0x50] sm:$0xff]
                  %794 = vst [vmem:[%s772 + $0x50] sm:$0xff] %v793
                  %v795 = vld [vmem:[%s771 + $0x58] sm:$0xff]
                  %796 = vst [vmem:[%s772 + $0x58] sm:$0xff] %v795
                  %v797 = vld [vmem:[%s771 + $0x60] sm:$0xff]
                  %798 = vst [vmem:[%s772 + $0x60] sm:$0xff] %v797
                  %s799 = sadd.s32 1, %s770
                  %p800 = scmp.ge.s32.totalorder %s799, %s762
                  %s801 = scalar_select %p800, 0, %s799
                  %s802 = smul.u32 %s801, 104
                  %s803 = smul.u32 %s801, 104
                  %s804 = scalar_lea.vmem %s666, %s802 [#allocation3]
                  %s805 = scalar_lea.vmem %s681, %s803
                $region87: #{tpu_custom_call.1} parent=81 // loop_footer
                  %s767 = sadd.s32 %s765, 1
                $region88: #{tpu_custom_call.1} parent=81 // loop_footer_branch
                  %764 = sbr.rel target = $region84
                $region89: #{tpu_custom_call.1} parent=81 // loop_exit
                  _
                %s806 = sdiv.u32.pop %s677, 13
                %s807 = srem.u32.pop %s677, 13
                %s808 = smul.u32 %s806, 13
                %s809 = smul.u32 8, %s808
                %s810 = scalar_lea.vmem %s666, %s809 [#allocation3]
                %s811 = smul.u32 8, %s808
                %s812 = scalar_lea.vmem %s681, %s811
                // While loop
                $region90: #{tpu_custom_call.1} parent=81 // loop_pre_header
                  _
                $region91: #{tpu_custom_call.1} parent=81 // loop_header
                  %s814 = sphi 0, %s816
                  %p815 = scmp.ge.s32.totalorder %s814, %s807
                  %s819 = sphi 0, %s826
                  %s820 = sphi %s810, %s829
                  %s821 = sphi %s812, %s830
                $region92: #{tpu_custom_call.1} parent=81 // loop_header_branch
                  %818 = sbr.rel (%p815) target = $region96
                $region93: #{tpu_custom_call.1} parent=81 // loop_body
                  %v822 = vld [vmem:[%s820] sm:$0xff]
                  %823 = vst [vmem:[%s821] sm:$0xff] %v822
                  %s824 = sadd.s32 1, %s819
                  %p825 = scmp.ge.s32.totalorder %s824, %s807
                  %s826 = scalar_select %p825, 0, %s824
                  %s827 = smul.u32 %s826, 8
                  %s828 = smul.u32 %s826, 8
                  %s829 = scalar_lea.vmem %s810, %s827 [#allocation3]
                  %s830 = scalar_lea.vmem %s812, %s828
                $region94: #{tpu_custom_call.1} parent=81 // loop_footer
                  %s816 = sadd.s32 %s814, 1
                $region95: #{tpu_custom_call.1} parent=81 // loop_footer_branch
                  %813 = sbr.rel target = $region91
                $region96: #{tpu_custom_call.1} parent=81 // loop_exit
                  _
              $region82: #{tpu_custom_call.1} parent=59 // pred_fallthru
                _
              // Predicated region
              $region97: #{tpu_custom_call.1} parent=59 // pred_check
                _
              $region98: #{tpu_custom_call.1} parent=59 // pred_check_branch
                %832 = sbr.rel target = $region100
              $region99: #{tpu_custom_call.1} parent=59 // pred_region
                _
              $region100: #{tpu_custom_call.1} parent=59 // pred_fallthru
                _
            $region60: #{tpu_custom_call.1} parent=55 // pred_fallthru
              _
            // Predicated region
            $region61: #{tpu_custom_call.1} parent=55 // pred_check
              _
            $region62: #{tpu_custom_call.1} parent=55 // pred_check_branch
              %688 = sbr.rel target = $region64
            $region63: #{tpu_custom_call.1} parent=55 // pred_region
              %s690 = ssub.s32 256, 1
              %s691 = sdiv.u32.pop %s677, 13
              %s692 = srem.u32.pop %s677, 13
              // While loop
              $region65: #{tpu_custom_call.1} parent=63 // loop_pre_header
                _
              $region66: #{tpu_custom_call.1} parent=63 // loop_header
                %s694 = sphi 0, %s696
                %p695 = scmp.ge.s32.totalorder %s694, %s691
                %s699 = sphi 0, %s730
                %s700 = sphi %s666, %s733
                %s701 = sphi %s681, %s734
              $region67: #{tpu_custom_call.1} parent=63 // loop_header_branch
                %698 = sbr.rel (%p695) target = $region71
              $region68: #{tpu_custom_call.1} parent=63 // loop_body
                %v702 = vld [vmem:[%s700] sm:%s690]
                %703 = vst [vmem:[%s701] sm:%s690] %v702
                %v704 = vld [vmem:[%s700 + $0x8] sm:%s690]
                %705 = vst [vmem:[%s701 + $0x8] sm:%s690] %v704
                %v706 = vld [vmem:[%s700 + $0x10] sm:%s690]
                %707 = vst [vmem:[%s701 + $0x10] sm:%s690] %v706
                %v708 = vld [vmem:[%s700 + $0x18] sm:%s690]
                %709 = vst [vmem:[%s701 + $0x18] sm:%s690] %v708
                %v710 = vld [vmem:[%s700 + $0x20] sm:%s690]
                %711 = vst [vmem:[%s701 + $0x20] sm:%s690] %v710
                %v712 = vld [vmem:[%s700 + $0x28] sm:%s690]
                %713 = vst [vmem:[%s701 + $0x28] sm:%s690] %v712
                %v714 = vld [vmem:[%s700 + $0x30] sm:%s690]
                %715 = vst [vmem:[%s701 + $0x30] sm:%s690] %v714
                %v716 = vld [vmem:[%s700 + $0x38] sm:%s690]
                %717 = vst [vmem:[%s701 + $0x38] sm:%s690] %v716
                %v718 = vld [vmem:[%s700 + $0x40] sm:%s690]
                %719 = vst [vmem:[%s701 + $0x40] sm:%s690] %v718
                %v720 = vld [vmem:[%s700 + $0x48] sm:%s690]
                %721 = vst [vmem:[%s701 + $0x48] sm:%s690] %v720
                %v722 = vld [vmem:[%s700 + $0x50] sm:%s690]
                %723 = vst [vmem:[%s701 + $0x50] sm:%s690] %v722
                %v724 = vld [vmem:[%s700 + $0x58] sm:%s690]
                %725 = vst [vmem:[%s701 + $0x58] sm:%s690] %v724
                %v726 = vld [vmem:[%s700 + $0x60] sm:%s690]
                %727 = vst [vmem:[%s701 + $0x60] sm:%s690] %v726
                %s728 = sadd.s32 1, %s699
                %p729 = scmp.ge.s32.totalorder %s728, %s691
                %s730 = scalar_select %p729, 0, %s728
                %s731 = smul.u32 %s730, 104
                %s732 = smul.u32 %s730, 104
                %s733 = scalar_lea.vmem %s666, %s731 [#allocation3]
                %s734 = scalar_lea.vmem %s681, %s732
              $region69: #{tpu_custom_call.1} parent=63 // loop_footer
                %s696 = sadd.s32 %s694, 1
              $region70: #{tpu_custom_call.1} parent=63 // loop_footer_branch
                %693 = sbr.rel target = $region66
              $region71: #{tpu_custom_call.1} parent=63 // loop_exit
                _
              %s735 = sdiv.u32.pop %s677, 13
              %s736 = srem.u32.pop %s677, 13
              %s737 = smul.u32 %s735, 13
              %s738 = smul.u32 8, %s737
              %s739 = scalar_lea.vmem %s666, %s738 [#allocation3]
              %s740 = smul.u32 8, %s737
              %s741 = scalar_lea.vmem %s681, %s740
              // While loop
              $region72: #{tpu_custom_call.1} parent=63 // loop_pre_header
                _
              $region73: #{tpu_custom_call.1} parent=63 // loop_header
                %s743 = sphi 0, %s745
                %p744 = scmp.ge.s32.totalorder %s743, %s736
                %s748 = sphi 0, %s755
                %s749 = sphi %s739, %s758
                %s750 = sphi %s741, %s759
              $region74: #{tpu_custom_call.1} parent=63 // loop_header_branch
                %747 = sbr.rel (%p744) target = $region78
              $region75: #{tpu_custom_call.1} parent=63 // loop_body
                %v751 = vld [vmem:[%s749] sm:%s690]
                %752 = vst [vmem:[%s750] sm:%s690] %v751
                %s753 = sadd.s32 1, %s748
                %p754 = scmp.ge.s32.totalorder %s753, %s736
                %s755 = scalar_select %p754, 0, %s753
                %s756 = smul.u32 %s755, 8
                %s757 = smul.u32 %s755, 8
                %s758 = scalar_lea.vmem %s739, %s756 [#allocation3]
                %s759 = scalar_lea.vmem %s741, %s757
              $region76: #{tpu_custom_call.1} parent=63 // loop_footer
                %s745 = sadd.s32 %s743, 1
              $region77: #{tpu_custom_call.1} parent=63 // loop_footer_branch
                %742 = sbr.rel target = $region73
              $region78: #{tpu_custom_call.1} parent=63 // loop_exit
                _
            $region64: #{tpu_custom_call.1} parent=55 // pred_fallthru
              _
          $region56: #{tpu_custom_call.1} parent=51 // pred_fallthru
            _
          %833 = vnop
        $region52: #{tpu_custom_call.1} parent=47 // pred_fallthru
          _
        // Predicated region
        $region101: #{tpu_custom_call.1} parent=47 // pred_check
          %p834 = pneg %p218
        $region102: #{tpu_custom_call.1} parent=47 // pred_check_branch
          %836 = sbr.rel (%p834) target = $region104
        $region103: #{tpu_custom_call.1} parent=47 // pred_region
          %s837 = smul.u32 13, %s22
          %s838 = ssub.s32 25, %s837
          %p839 = scmp.lt.s32.totalorder %s838, 13
          %s840 = scalar_select %p839, %s838, 13
          %s841 = smul.u32 8, %s840
          %p842 = scmp.ne.s32.totalorder 0, %s841
          %s843 = smul.addr %s837, 8
          %s844 = scalar_lea.vmem %s8, %s843
          // Predicated region
          $region105: #{tpu_custom_call.1} parent=103 // pred_check
            %p845 = pneg %p842
          $region106: #{tpu_custom_call.1} parent=103 // pred_check_branch
            %847 = sbr.rel (%p845) target = $region108
          $region107: #{tpu_custom_call.1} parent=103 // pred_region
            // Predicated region
            $region109: #{tpu_custom_call.1} parent=107 // pred_check
              _
            $region110: #{tpu_custom_call.1} parent=107 // pred_check_branch
              %849 = sbr.rel (0) target = $region112
            $region111: #{tpu_custom_call.1} parent=107 // pred_region
              // Predicated region
              $region131: #{tpu_custom_call.1} parent=111 // pred_check
                _
              $region132: #{tpu_custom_call.1} parent=111 // pred_check_branch
                %924 = sbr.rel (0) target = $region134
              $region133: #{tpu_custom_call.1} parent=111 // pred_region
                %s925 = sdiv.u32.pop %s840, 13
                %s926 = srem.u32.pop %s840, 13
                // While loop
                $region135: #{tpu_custom_call.1} parent=133 // loop_pre_header
                  _
                $region136: #{tpu_custom_call.1} parent=133 // loop_header
                  %s928 = sphi 0, %s930
                  %p929 = scmp.ge.s32.totalorder %s928, %s925
                  %s933 = sphi 0, %s964
                  %s934 = sphi %s670, %s967
                  %s935 = sphi %s844, %s968
                $region137: #{tpu_custom_call.1} parent=133 // loop_header_branch
                  %932 = sbr.rel (%p929) target = $region141
                $region138: #{tpu_custom_call.1} parent=133 // loop_body
                  %v936 = vld [vmem:[%s934] sm:$0xff]
                  %937 = vst [vmem:[%s935] sm:$0xff] %v936
                  %v938 = vld [vmem:[%s934 + $0x8] sm:$0xff]
                  %939 = vst [vmem:[%s935 + $0x8] sm:$0xff] %v938
                  %v940 = vld [vmem:[%s934 + $0x10] sm:$0xff]
                  %941 = vst [vmem:[%s935 + $0x10] sm:$0xff] %v940
                  %v942 = vld [vmem:[%s934 + $0x18] sm:$0xff]
                  %943 = vst [vmem:[%s935 + $0x18] sm:$0xff] %v942
                  %v944 = vld [vmem:[%s934 + $0x20] sm:$0xff]
                  %945 = vst [vmem:[%s935 + $0x20] sm:$0xff] %v944
                  %v946 = vld [vmem:[%s934 + $0x28] sm:$0xff]
                  %947 = vst [vmem:[%s935 + $0x28] sm:$0xff] %v946
                  %v948 = vld [vmem:[%s934 + $0x30] sm:$0xff]
                  %949 = vst [vmem:[%s935 + $0x30] sm:$0xff] %v948
                  %v950 = vld [vmem:[%s934 + $0x38] sm:$0xff]
                  %951 = vst [vmem:[%s935 + $0x38] sm:$0xff] %v950
                  %v952 = vld [vmem:[%s934 + $0x40] sm:$0xff]
                  %953 = vst [vmem:[%s935 + $0x40] sm:$0xff] %v952
                  %v954 = vld [vmem:[%s934 + $0x48] sm:$0xff]
                  %955 = vst [vmem:[%s935 + $0x48] sm:$0xff] %v954
                  %v956 = vld [vmem:[%s934 + $0x50] sm:$0xff]
                  %957 = vst [vmem:[%s935 + $0x50] sm:$0xff] %v956
                  %v958 = vld [vmem:[%s934 + $0x58] sm:$0xff]
                  %959 = vst [vmem:[%s935 + $0x58] sm:$0xff] %v958
                  %v960 = vld [vmem:[%s934 + $0x60] sm:$0xff]
                  %961 = vst [vmem:[%s935 + $0x60] sm:$0xff] %v960
                  %s962 = sadd.s32 1, %s933
                  %p963 = scmp.ge.s32.totalorder %s962, %s925
                  %s964 = scalar_select %p963, 0, %s962
                  %s965 = smul.u32 %s964, 104
                  %s966 = smul.u32 %s964, 104
                  %s967 = scalar_lea.vmem %s670, %s965 [#allocation4]
                  %s968 = scalar_lea.vmem %s844, %s966
                $region139: #{tpu_custom_call.1} parent=133 // loop_footer
                  %s930 = sadd.s32 %s928, 1
                $region140: #{tpu_custom_call.1} parent=133 // loop_footer_branch
                  %927 = sbr.rel target = $region136
                $region141: #{tpu_custom_call.1} parent=133 // loop_exit
                  _
                %s969 = sdiv.u32.pop %s840, 13
                %s970 = srem.u32.pop %s840, 13
                %s971 = smul.u32 %s969, 13
                %s972 = smul.u32 8, %s971
                %s973 = scalar_lea.vmem %s670, %s972 [#allocation4]
                %s974 = smul.u32 8, %s971
                %s975 = scalar_lea.vmem %s844, %s974
                // While loop
                $region142: #{tpu_custom_call.1} parent=133 // loop_pre_header
                  _
                $region143: #{tpu_custom_call.1} parent=133 // loop_header
                  %s977 = sphi 0, %s979
                  %p978 = scmp.ge.s32.totalorder %s977, %s970
                  %s982 = sphi 0, %s989
                  %s983 = sphi %s973, %s992
                  %s984 = sphi %s975, %s993
                $region144: #{tpu_custom_call.1} parent=133 // loop_header_branch
                  %981 = sbr.rel (%p978) target = $region148
                $region145: #{tpu_custom_call.1} parent=133 // loop_body
                  %v985 = vld [vmem:[%s983] sm:$0xff]
                  %986 = vst [vmem:[%s984] sm:$0xff] %v985
                  %s987 = sadd.s32 1, %s982
                  %p988 = scmp.ge.s32.totalorder %s987, %s970
                  %s989 = scalar_select %p988, 0, %s987
                  %s990 = smul.u32 %s989, 8
                  %s991 = smul.u32 %s989, 8
                  %s992 = scalar_lea.vmem %s973, %s990 [#allocation4]
                  %s993 = scalar_lea.vmem %s975, %s991
                $region146: #{tpu_custom_call.1} parent=133 // loop_footer
                  %s979 = sadd.s32 %s977, 1
                $region147: #{tpu_custom_call.1} parent=133 // loop_footer_branch
                  %976 = sbr.rel target = $region143
                $region148: #{tpu_custom_call.1} parent=133 // loop_exit
                  _
              $region134: #{tpu_custom_call.1} parent=111 // pred_fallthru
                _
              // Predicated region
              $region149: #{tpu_custom_call.1} parent=111 // pred_check
                _
              $region150: #{tpu_custom_call.1} parent=111 // pred_check_branch
                %995 = sbr.rel target = $region152
              $region151: #{tpu_custom_call.1} parent=111 // pred_region
                _
              $region152: #{tpu_custom_call.1} parent=111 // pred_fallthru
                _
            $region112: #{tpu_custom_call.1} parent=107 // pred_fallthru
              _
            // Predicated region
            $region113: #{tpu_custom_call.1} parent=107 // pred_check
              _
            $region114: #{tpu_custom_call.1} parent=107 // pred_check_branch
              %851 = sbr.rel target = $region116
            $region115: #{tpu_custom_call.1} parent=107 // pred_region
              %s853 = ssub.s32 256, 1
              %s854 = sdiv.u32.pop %s840, 13
              %s855 = srem.u32.pop %s840, 13
              // While loop
              $region117: #{tpu_custom_call.1} parent=115 // loop_pre_header
                _
              $region118: #{tpu_custom_call.1} parent=115 // loop_header
                %s857 = sphi 0, %s859
                %p858 = scmp.ge.s32.totalorder %s857, %s854
                %s862 = sphi 0, %s893
                %s863 = sphi %s670, %s896
                %s864 = sphi %s844, %s897
              $region119: #{tpu_custom_call.1} parent=115 // loop_header_branch
                %861 = sbr.rel (%p858) target = $region123
              $region120: #{tpu_custom_call.1} parent=115 // loop_body
                %v865 = vld [vmem:[%s863] sm:%s853]
                %866 = vst [vmem:[%s864] sm:%s853] %v865
                %v867 = vld [vmem:[%s863 + $0x8] sm:%s853]
                %868 = vst [vmem:[%s864 + $0x8] sm:%s853] %v867
                %v869 = vld [vmem:[%s863 + $0x10] sm:%s853]
                %870 = vst [vmem:[%s864 + $0x10] sm:%s853] %v869
                %v871 = vld [vmem:[%s863 + $0x18] sm:%s853]
                %872 = vst [vmem:[%s864 + $0x18] sm:%s853] %v871
                %v873 = vld [vmem:[%s863 + $0x20] sm:%s853]
                %874 = vst [vmem:[%s864 + $0x20] sm:%s853] %v873
                %v875 = vld [vmem:[%s863 + $0x28] sm:%s853]
                %876 = vst [vmem:[%s864 + $0x28] sm:%s853] %v875
                %v877 = vld [vmem:[%s863 + $0x30] sm:%s853]
                %878 = vst [vmem:[%s864 + $0x30] sm:%s853] %v877
                %v879 = vld [vmem:[%s863 + $0x38] sm:%s853]
                %880 = vst [vmem:[%s864 + $0x38] sm:%s853] %v879
                %v881 = vld [vmem:[%s863 + $0x40] sm:%s853]
                %882 = vst [vmem:[%s864 + $0x40] sm:%s853] %v881
                %v883 = vld [vmem:[%s863 + $0x48] sm:%s853]
                %884 = vst [vmem:[%s864 + $0x48] sm:%s853] %v883
                %v885 = vld [vmem:[%s863 + $0x50] sm:%s853]
                %886 = vst [vmem:[%s864 + $0x50] sm:%s853] %v885
                %v887 = vld [vmem:[%s863 + $0x58] sm:%s853]
                %888 = vst [vmem:[%s864 + $0x58] sm:%s853] %v887
                %v889 = vld [vmem:[%s863 + $0x60] sm:%s853]
                %890 = vst [vmem:[%s864 + $0x60] sm:%s853] %v889
                %s891 = sadd.s32 1, %s862
                %p892 = scmp.ge.s32.totalorder %s891, %s854
                %s893 = scalar_select %p892, 0, %s891
                %s894 = smul.u32 %s893, 104
                %s895 = smul.u32 %s893, 104
                %s896 = scalar_lea.vmem %s670, %s894 [#allocation4]
                %s897 = scalar_lea.vmem %s844, %s895
              $region121: #{tpu_custom_call.1} parent=115 // loop_footer
                %s859 = sadd.s32 %s857, 1
              $region122: #{tpu_custom_call.1} parent=115 // loop_footer_branch
                %856 = sbr.rel target = $region118
              $region123: #{tpu_custom_call.1} parent=115 // loop_exit
                _
              %s898 = sdiv.u32.pop %s840, 13
              %s899 = srem.u32.pop %s840, 13
              %s900 = smul.u32 %s898, 13
              %s901 = smul.u32 8, %s900
              %s902 = scalar_lea.vmem %s670, %s901 [#allocation4]
              %s903 = smul.u32 8, %s900
              %s904 = scalar_lea.vmem %s844, %s903
              // While loop
              $region124: #{tpu_custom_call.1} parent=115 // loop_pre_header
                _
              $region125: #{tpu_custom_call.1} parent=115 // loop_header
                %s906 = sphi 0, %s908
                %p907 = scmp.ge.s32.totalorder %s906, %s899
                %s911 = sphi 0, %s918
                %s912 = sphi %s902, %s921
                %s913 = sphi %s904, %s922
              $region126: #{tpu_custom_call.1} parent=115 // loop_header_branch
                %910 = sbr.rel (%p907) target = $region130
              $region127: #{tpu_custom_call.1} parent=115 // loop_body
                %v914 = vld [vmem:[%s912] sm:%s853]
                %915 = vst [vmem:[%s913] sm:%s853] %v914
                %s916 = sadd.s32 1, %s911
                %p917 = scmp.ge.s32.totalorder %s916, %s899
                %s918 = scalar_select %p917, 0, %s916
                %s919 = smul.u32 %s918, 8
                %s920 = smul.u32 %s918, 8
                %s921 = scalar_lea.vmem %s902, %s919 [#allocation4]
                %s922 = scalar_lea.vmem %s904, %s920
              $region128: #{tpu_custom_call.1} parent=115 // loop_footer
                %s908 = sadd.s32 %s906, 1
              $region129: #{tpu_custom_call.1} parent=115 // loop_footer_branch
                %905 = sbr.rel target = $region125
              $region130: #{tpu_custom_call.1} parent=115 // loop_exit
                _
            $region116: #{tpu_custom_call.1} parent=107 // pred_fallthru
              _
          $region108: #{tpu_custom_call.1} parent=103 // pred_fallthru
            _
          %996 = vnop
        $region104: #{tpu_custom_call.1} parent=47 // pred_fallthru
          _
      $region48: #{tpu_custom_call.1} parent=5 // pred_fallthru
        _
      %p997 = scmp.le.s32.totalorder 2, %s17
      // Predicated region
      $region153: #{tpu_custom_call.1} parent=5 // pred_check
        %p998 = pneg %p997
      $region154: #{tpu_custom_call.1} parent=5 // pred_check_branch
        %1000 = sbr.rel (%p998) target = $region156
      $region155: #{tpu_custom_call.1} parent=5 // pred_region
        %s1001 = ssub.s32 %s17, 2
        // Predicated region
        $region157: #{tpu_custom_call.1} parent=155 // pred_check
          %p1002 = pneg %p198
        $region158: #{tpu_custom_call.1} parent=155 // pred_check_branch
          %1004 = sbr.rel (%p1002) target = $region160
        $region159: #{tpu_custom_call.1} parent=155 // pred_region
          %s1005 = sand.u32 %s183, 1
          %s1006 = sand.u32 %s183, 1
          %s1007 = smul.addr %s1006, 104
          %s1008 = scalar_lea.vmem [#allocation3], %s1007
        $region160: #{tpu_custom_call.1} parent=155 // pred_fallthru
          _
        // Predicated region
        $region161: #{tpu_custom_call.1} parent=155 // pred_check
          %p1009 = pneg %p224
        $region162: #{tpu_custom_call.1} parent=155 // pred_check_branch
          %1011 = sbr.rel (%p1009) target = $region164
        $region163: #{tpu_custom_call.1} parent=155 // pred_region
          %s1012 = sand.u32 %s209, 1
          %s1013 = sand.u32 %s209, 1
          %s1014 = smul.addr %s1013, 104
          %s1015 = scalar_lea.vmem [#allocation4], %s1014
        $region164: #{tpu_custom_call.1} parent=155 // pred_fallthru
          _
      $region156: #{tpu_custom_call.1} parent=5 // pred_fallthru
        _
    $region6: #{tpu_custom_call.1} parent=1 // loop_footer
      %s21 = sadd.s32 1, %s17
    $region7: #{tpu_custom_call.1} parent=1 // loop_footer_branch
      %16 = sbr.rel target = $region3
    $region8: #{tpu_custom_call.1} parent=1 // loop_exit
      _

</llo_original>
